<compile_context>
chip_gen: v7x
topology: tpu7x:2x2x1
jax: 0.10.0
libtpu: 0.0.40
codegen_flags: <defaults>
</compile_context>

<pallas_src>
import functools
import string

import numpy as np
import jax
import jax.numpy as jnp
from jax import lax
from jax.experimental import pallas as pl
from jax.experimental.pallas import tpu as pltpu

_LANE = 128                  # time axis granularity (lane width)
_TT_MAX = 8192               # max time-tile (lanes) per block
_TR_CHUNK = 128              # frames transposed per chunk (bounds vreg pressure)
_VMEM_TILE_BUDGET = 12 << 20 # bytes for 2 input buffers + transpose scratch


def _pick_time_tile(T, C, itemsize):
    """Time tile: as large as the VMEM budget allows, capped at _TT_MAX and at
    what the sequence actually needs.  The budget keeps 2 pipelined input
    buffers (minor dim lane-padded to >=128 in VMEM) + the (C, tt) transposed
    scratch well inside v7x's 32 MiB scoped VMEM even for large vocabularies."""
    lane_padded_c = max(C, _LANE)
    per_lane = (2 * lane_padded_c + C) * itemsize
    tt = int(_VMEM_TILE_BUDGET // per_lane)
    tt = max(_LANE, min(_TT_MAX, (tt // _LANE) * _LANE))
    return min(tt, pl.cdiv(T, _LANE) * _LANE)


def _ctc_kernel(e_ref, out_ref, tr_ref, carry_ref, *, blank, nan_safe):
    """One (tt, C) emission tile -> (1, tt) int32 (kept class index or -1).

    e_ref:     (tt, C) emission tile — time on sublanes (contiguous HBM read).
    out_ref:   (1, tt) int32 merged output (lane-dense store).
    tr_ref:    (C, tt) VMEM scratch, input dtype — transposed tile.
    carry_ref: (1, 1) int32 VMEM scratch — previous tile's last argmax.
    """
    i = pl.program_id(1)

    @pl.when(i == 0)
    def _():
        carry_ref[...] = jnp.full((1, 1), -1, jnp.int32)

    C, tt = tr_ref.shape

    # --- on-chip relayout: classes -> sublanes, time -> lanes ----------------
    # Chunked so each (128, C) slice stays a handful of vregs (no spill); the
    # XLU transposes hide under the (contiguous) input DMA.  bf16 stays packed.
    for j in range(tt // _TR_CHUNK):
        o = j * _TR_CHUNK
        tr_ref[:, pl.ds(o, _TR_CHUNK)] = e_ref[pl.ds(o, _TR_CHUNK), :].T

    # --- running argmax over the C class rows --------------------------------
    # Live set is a couple of (1, tt) rows instead of 3-4 full (C, tt) tiles.
    # Per-row upcast to f32 keeps the compare path exact and v5e-safe while the
    # heavy traffic (DMA, transpose, scratch) stays in the input dtype.
    best_v = tr_ref[pl.ds(0, 1), :].astype(jnp.float32)
    best_i = jnp.zeros((1, tt), jnp.int32)

    def step(c, carry):
        bv, bi = carry
        v = tr_ref[pl.ds(c, 1), :].astype(jnp.float32)
        take = v > bv                       # strict '>' => first occurrence on ties
        if nan_safe:                        # torch.argmax: first NaN wins if present
            take = take | (jnp.isnan(v) & ~jnp.isnan(bv))
        return jnp.where(take, v, bv), jnp.where(take, c, bi)

    if C <= 128:
        for c in range(1, C):               # small vocab: fully unrolled, static slices
            best_v, best_i = step(c, (best_v, best_i))
    else:                                    # large vocab: rolled loop
        best_v, best_i = lax.fori_loop(1, C, step, (best_v, best_i), unroll=8)

    idx = best_i                             # (1, tt) argmax class per frame

    # --- unique_consecutive + blank removal, merged lane-dense output --------
    rolled = pltpu.roll(idx, shift=1, axis=1)            # rolled[:,0] == idx[:,tt-1]
    lane = lax.broadcasted_iota(jnp.int32, (1, tt), 1)
    prev = jnp.where(lane == 0, carry_ref[...], rolled)  # stitch tile boundary
    keep = (idx != prev) & (idx != blank)
    out_ref[...] = jnp.where(keep, idx, -1)

    # carry this tile's last argmax into the next (sequential) time tile
    carry_ref[...] = rolled[:, 0:1]


@functools.partial(jax.jit, static_argnums=(1, 2, 3))
def _ctc_greedy_indices(emission_btc, blank, nan_safe, time_tile):
    """emission_btc: (B, T, C) float -> (B, 1, t_pad) int32 (kept index or -1)."""
    B, T, C = emission_btc.shape
    itemsize = jnp.dtype(emission_btc.dtype).itemsize
    tt = time_tile if time_tile is not None else _pick_time_tile(T, C, itemsize)
    n_t = pl.cdiv(T, tt)          # partial last tile handled by Pallas block padding
    t_pad = n_t * tt              # output padded so every store is lane-dense

    kernel = functools.partial(_ctc_kernel, blank=blank, nan_safe=nan_safe)
    return pl.pallas_call(
        kernel,
        grid=(B, n_t),
        in_specs=[pl.BlockSpec((None, tt, C), lambda b, i: (b, i, 0))],
        out_specs=pl.BlockSpec((None, 1, tt), lambda b, i: (b, 0, i)),
        out_shape=jax.ShapeDtypeStruct((B, 1, t_pad), jnp.int32),
        scratch_shapes=[
            pltpu.VMEM((C, tt), emission_btc.dtype),   # transposed tile
            pltpu.VMEM((1, 1), jnp.int32),             # cross-tile argmax carry
        ],
        compiler_params=pltpu.CompilerParams(
            # batch axis is independent (v7x megacore); the carry makes the
            # time-tile axis a sequential dependence.
            dimension_semantics=("parallel", "arbitrary"),
            vmem_limit_bytes=32 * 1024 * 1024,
        ),
    )(emission_btc)


def _join(idx_row, labels):
    """Vectorized host join: kept indices -> string."""
    kept = idx_row[idx_row >= 0]
    if kept.size == 0:
        return ''
    lut = np.asarray(labels)
    return ''.join(lut[kept].tolist())


def greedy_ctc_decode(emission, labels, blank=0, nan_safe=False, time_tile=None):
    """Mirrors GreedyCTCDecoder.forward: emission (T, C) float -> decoded str."""
    T = emission.shape[0]
    out = _ctc_greedy_indices(emission[None], int(blank), bool(nan_safe), time_tile)
    out_h = np.asarray(jax.device_get(out)).reshape(-1)[:T]
    # TODO(synk): the final join returns a Python str of data-dependent length,
    # so it stays host-side on the kernel-computed (index-or--1) stream.
    return _join(out_h, labels)


def greedy_ctc_decode_batch(emissions, labels, blank=0, nan_safe=False, time_tile=None):
    """Batched decode: list of (T_i, C) emissions -> list of strings.
    One pallas_call (leading 'parallel' batch axis) and one device transfer."""
    lengths = [int(e.shape[0]) for e in emissions]
    t_max = max(lengths)
    batch = jnp.stack(
        [jnp.pad(e, ((0, t_max - e.shape[0]), (0, 0))) for e in emissions])
    out = _ctc_greedy_indices(batch, int(blank), bool(nan_safe), time_tile)
    out_h = np.asarray(jax.device_get(out)).reshape(len(emissions), -1)
    return [_join(out_h[b, :lengths[b]], labels) for b in range(len(emissions))]


class GreedyCTCDecoder:
    """Drop-in mirror of the PyTorch module's interface."""

    def __init__(self, labels, blank=0):
        self.labels = labels
        self.blank = blank

    def forward(self, emission):
        return greedy_ctc_decode(emission, self.labels, blank=self.blank)

    __call__ = forward


def _reference_decode(emission_np, labels, blank=0):
    """Plain host reference of the PyTorch forward semantics."""
    indices = emission_np.argmax(axis=-1).tolist()
    uniq = []
    for v in indices:
        if not uniq or uniq[-1] != v:
            uniq.append(v)
    return ''.join(labels[i] for i in uniq if i != blank)


if __name__ == "__main__":
    key = jax.random.PRNGKey(0)
    labels = ["-"] + list(string.ascii_lowercase) + ["'", " ", ".", ",", "?"]
    C = len(labels)  # 32 classes; labels[0] is the blank symbol
    k1, k2, k3, k4 = jax.random.split(key, 4)

    decoder = GreedyCTCDecoder(labels, blank=0)

    # --- small single-tile case: T=16, f32 ----------------------------------
    T = 16
    emission = jax.random.normal(k1, (T, C), dtype=jnp.float32)
    out = _ctc_greedy_indices(emission[None], 0, False, None)
    jax.block_until_ready(out)
    decoded = decoder(emission)
    ref = _reference_decode(np.asarray(jax.device_get(emission)), labels)
    assert decoded == ref, f"mismatch: kernel={decoded!r} ref={ref!r}"

    # --- multi-tile bf16 case: T=700, forced 128-lane tiles (exercises the
    #     cross-tile carry and the partial last block) --------------------
    T2 = 700
    emission2 = jax.random.normal(k2, (T2, C), dtype=jnp.bfloat16)
    decoded2 = greedy_ctc_decode(emission2, labels, blank=0, time_tile=128)
    ref2 = _reference_decode(
        np.asarray(jax.device_get(emission2)).astype(np.float32), labels)
    assert decoded2 == ref2, f"mismatch (tiled/bf16): {decoded2!r} vs {ref2!r}"

    # --- batched case: two utterances of different lengths ------------------
    em3 = jax.random.normal(k3, (300, C), dtype=jnp.float32)
    em4 = jax.random.normal(k4, (457, C), dtype=jnp.float32)
    decoded_b = greedy_ctc_decode_batch([em3, em4], labels, blank=0)
    refs_b = [_reference_decode(np.asarray(jax.device_get(e)), labels)
              for e in (em3, em4)]
    assert decoded_b == refs_b, f"mismatch (batch): {decoded_b!r} vs {refs_b!r}"

    print("KERNEL_OK")
</pallas_src>

<mosaic_0001>
module attributes {stable_mosaic.version = 11 : i64} {
  func.func @_ctc_kernel(%arg0: i32, %arg1: i32, %arg2: memref<1x128x32xf32, #tpu.memory_space<vmem>>, %arg3: memref<1x1x128xi32, #tpu.memory_space<vmem>>, %arg4: memref<32x128xf32, #tpu.memory_space<vmem>>, %arg5: memref<1x1xi32, #tpu.memory_space<vmem>>) attributes {dimension_semantics = [#tpu.dimension_semantics<parallel>, #tpu.dimension_semantics<arbitrary>], iteration_bounds = array<i64: 1, 1>, scalar_prefetch = 0 : i64, scratch_operands = 2 : i64, tpu.core_type = #tpu.core_type<tc>, window_params = [{transform_indices = @transform_0, window_bounds = array<i64: 1, 128, 32>}, {transform_indices = @transform_1, window_bounds = array<i64: 1, 1, 128>}]} {
    %c0_i32 = arith.constant 0 : i32
    %0 = arith.cmpi eq, %arg1, %c0_i32 : i32
    %1 = arith.extui %0 : i1 to i32
    %c0_i32_0 = arith.constant 0 : i32
    %2 = arith.cmpi ne, %1, %c0_i32_0 : i32
    scf.if %2 {
      %c-1_i32_49 = arith.constant -1 : i32
      %182 = vector.broadcast %c-1_i32_49 : i32 to vector<1x1xi32>
      %c0_50 = arith.constant 0 : index
      %c0_51 = arith.constant 0 : index
      %183 = vector.load %arg5[%c0_50, %c0_51] : memref<1x1xi32, #tpu.memory_space<vmem>>, vector<1x1xi32>
      tpu.vector_store %arg5[%c0_50, %c0_51], %182 {strides = array<i32>} : memref<1x1xi32, #tpu.memory_space<vmem>>, vector<1x1xi32>,
    } else {
    }
    %c0 = arith.constant 0 : index
    %c0_1 = arith.constant 0 : index
    %c0_2 = arith.constant 0 : index
    %3 = vector.load %arg2[%c0, %c0_1, %c0_2] : memref<1x128x32xf32, #tpu.memory_space<vmem>>, vector<1x128x32xf32>
    %4 = vector.shape_cast %3 : vector<1x128x32xf32> to vector<128x32xf32>
    %5 = tpu.transpose %4, [1, 0] : vector<128x32xf32> -> vector<32x128xf32>
    %c0_3 = arith.constant 0 : index
    %c0_4 = arith.constant 0 : index
    %6 = vector.load %arg4[%c0_3, %c0_4] : memref<32x128xf32, #tpu.memory_space<vmem>>, vector<32x128xf32>
    tpu.vector_store %arg4[%c0_3, %c0_4], %5 {strides = array<i32>} : memref<32x128xf32, #tpu.memory_space<vmem>>, vector<32x128xf32>,
    %c0_5 = arith.constant 0 : index
    %c0_6 = arith.constant 0 : index
    %7 = vector.load %arg4[%c0_5, %c0_6] : memref<32x128xf32, #tpu.memory_space<vmem>>, vector<1x128xf32>
    %c0_i32_7 = arith.constant 0 : i32
    %8 = vector.broadcast %c0_i32_7 : i32 to vector<1x128xi32>
    %c1 = arith.constant 1 : index
    %c0_8 = arith.constant 0 : index
    %9 = vector.load %arg4[%c1, %c0_8] : memref<32x128xf32, #tpu.memory_space<vmem>>, vector<1x128xf32>
    %10 = arith.cmpf ogt, %9, %7 : vector<1x128xf32>
    %11 = arith.select %10, %9, %7 : vector<1x128xi1>, vector<1x128xf32>
    %c1_i32 = arith.constant 1 : i32
    %12 = vector.broadcast %c1_i32 : i32 to vector<1x128xi32>
    %13 = arith.select %10, %12, %8 : vector<1x128xi1>, vector<1x128xi32>
    %c2 = arith.constant 2 : index
    %c0_9 = arith.constant 0 : index
    %14 = vector.load %arg4[%c2, %c0_9] : memref<32x128xf32, #tpu.memory_space<vmem>>, vector<1x128xf32>
    %15 = arith.cmpf ogt, %14, %11 : vector<1x128xf32>
    %16 = arith.select %15, %14, %11 : vector<1x128xi1>, vector<1x128xf32>
    %c2_i32 = arith.constant 2 : i32
    %17 = vector.broadcast %c2_i32 : i32 to vector<1x128xi32>
    %18 = arith.select %15, %17, %13 : vector<1x128xi1>, vector<1x128xi32>
    %c3 = arith.constant 3 : index
    %c0_10 = arith.constant 0 : index
    %19 = vector.load %arg4[%c3, %c0_10] : memref<32x128xf32, #tpu.memory_space<vmem>>, vector<1x128xf32>
    %20 = arith.cmpf ogt, %19, %16 : vector<1x128xf32>
    %21 = arith.select %20, %19, %16 : vector<1x128xi1>, vector<1x128xf32>
    %c3_i32 = arith.constant 3 : i32
    %22 = vector.broadcast %c3_i32 : i32 to vector<1x128xi32>
    %23 = arith.select %20, %22, %18 : vector<1x128xi1>, vector<1x128xi32>
    %c4 = arith.constant 4 : index
    %c0_11 = arith.constant 0 : index
    %24 = vector.load %arg4[%c4, %c0_11] : memref<32x128xf32, #tpu.memory_space<vmem>>, vector<1x128xf32>
    %25 = arith.cmpf ogt, %24, %21 : vector<1x128xf32>
    %26 = arith.select %25, %24, %21 : vector<1x128xi1>, vector<1x128xf32>
    %c4_i32 = arith.constant 4 : i32
    %27 = vector.broadcast %c4_i32 : i32 to vector<1x128xi32>
    %28 = arith.select %25, %27, %23 : vector<1x128xi1>, vector<1x128xi32>
    %c5 = arith.constant 5 : index
    %c0_12 = arith.constant 0 : index
    %29 = vector.load %arg4[%c5, %c0_12] : memref<32x128xf32, #tpu.memory_space<vmem>>, vector<1x128xf32>
    %30 = arith.cmpf ogt, %29, %26 : vector<1x128xf32>
    %31 = arith.select %30, %29, %26 : vector<1x128xi1>, vector<1x128xf32>
    %c5_i32 = arith.constant 5 : i32
    %32 = vector.broadcast %c5_i32 : i32 to vector<1x128xi32>
    %33 = arith.select %30, %32, %28 : vector<1x128xi1>, vector<1x128xi32>
    %c6 = arith.constant 6 : index
    %c0_13 = arith.constant 0 : index
    %34 = vector.load %arg4[%c6, %c0_13] : memref<32x128xf32, #tpu.memory_space<vmem>>, vector<1x128xf32>
    %35 = arith.cmpf ogt, %34, %31 : vector<1x128xf32>
    %36 = arith.select %35, %34, %31 : vector<1x128xi1>, vector<1x128xf32>
    %c6_i32 = arith.constant 6 : i32
    %37 = vector.broadcast %c6_i32 : i32 to vector<1x128xi32>
    %38 = arith.select %35, %37, %33 : vector<1x128xi1>, vector<1x128xi32>
    %c7 = arith.constant 7 : index
    %c0_14 = arith.constant 0 : index
    %39 = vector.load %arg4[%c7, %c0_14] : memref<32x128xf32, #tpu.memory_space<vmem>>, vector<1x128xf32>
    %40 = arith.cmpf ogt, %39, %36 : vector<1x128xf32>
    %41 = arith.select %40, %39, %36 : vector<1x128xi1>, vector<1x128xf32>
    %c7_i32 = arith.constant 7 : i32
    %42 = vector.broadcast %c7_i32 : i32 to vector<1x128xi32>
    %43 = arith.select %40, %42, %38 : vector<1x128xi1>, vector<1x128xi32>
    %c8 = arith.constant 8 : index
    %c0_15 = arith.constant 0 : index
    %44 = vector.load %arg4[%c8, %c0_15] : memref<32x128xf32, #tpu.memory_space<vmem>>, vector<1x128xf32>
    %45 = arith.cmpf ogt, %44, %41 : vector<1x128xf32>
    %46 = arith.select %45, %44, %41 : vector<1x128xi1>, vector<1x128xf32>
    %c8_i32 = arith.constant 8 : i32
    %47 = vector.broadcast %c8_i32 : i32 to vector<1x128xi32>
    %48 = arith.select %45, %47, %43 : vector<1x128xi1>, vector<1x128xi32>
    %c9 = arith.constant 9 : index
    %c0_16 = arith.constant 0 : index
    %49 = vector.load %arg4[%c9, %c0_16] : memref<32x128xf32, #tpu.memory_space<vmem>>, vector<1x128xf32>
    %50 = arith.cmpf ogt, %49, %46 : vector<1x128xf32>
    %51 = arith.select %50, %49, %46 : vector<1x128xi1>, vector<1x128xf32>
    %c9_i32 = arith.constant 9 : i32
    %52 = vector.broadcast %c9_i32 : i32 to vector<1x128xi32>
    %53 = arith.select %50, %52, %48 : vector<1x128xi1>, vector<1x128xi32>
    %c10 = arith.constant 10 : index
    %c0_17 = arith.constant 0 : index
    %54 = vector.load %arg4[%c10, %c0_17] : memref<32x128xf32, #tpu.memory_space<vmem>>, vector<1x128xf32>
    %55 = arith.cmpf ogt, %54, %51 : vector<1x128xf32>
    %56 = arith.select %55, %54, %51 : vector<1x128xi1>, vector<1x128xf32>
    %c10_i32 = arith.constant 10 : i32
    %57 = vector.broadcast %c10_i32 : i32 to vector<1x128xi32>
    %58 = arith.select %55, %57, %53 : vector<1x128xi1>, vector<1x128xi32>
    %c11 = arith.constant 11 : index
    %c0_18 = arith.constant 0 : index
    %59 = vector.load %arg4[%c11, %c0_18] : memref<32x128xf32, #tpu.memory_space<vmem>>, vector<1x128xf32>
    %60 = arith.cmpf ogt, %59, %56 : vector<1x128xf32>
    %61 = arith.select %60, %59, %56 : vector<1x128xi1>, vector<1x128xf32>
    %c11_i32 = arith.constant 11 : i32
    %62 = vector.broadcast %c11_i32 : i32 to vector<1x128xi32>
    %63 = arith.select %60, %62, %58 : vector<1x128xi1>, vector<1x128xi32>
    %c12 = arith.constant 12 : index
    %c0_19 = arith.constant 0 : index
    %64 = vector.load %arg4[%c12, %c0_19] : memref<32x128xf32, #tpu.memory_space<vmem>>, vector<1x128xf32>
    %65 = arith.cmpf ogt, %64, %61 : vector<1x128xf32>
    %66 = arith.select %65, %64, %61 : vector<1x128xi1>, vector<1x128xf32>
    %c12_i32 = arith.constant 12 : i32
    %67 = vector.broadcast %c12_i32 : i32 to vector<1x128xi32>
    %68 = arith.select %65, %67, %63 : vector<1x128xi1>, vector<1x128xi32>
    %c13 = arith.constant 13 : index
    %c0_20 = arith.constant 0 : index
    %69 = vector.load %arg4[%c13, %c0_20] : memref<32x128xf32, #tpu.memory_space<vmem>>, vector<1x128xf32>
    %70 = arith.cmpf ogt, %69, %66 : vector<1x128xf32>
    %71 = arith.select %70, %69, %66 : vector<1x128xi1>, vector<1x128xf32>
    %c13_i32 = arith.constant 13 : i32
    %72 = vector.broadcast %c13_i32 : i32 to vector<1x128xi32>
    %73 = arith.select %70, %72, %68 : vector<1x128xi1>, vector<1x128xi32>
    %c14 = arith.constant 14 : index
    %c0_21 = arith.constant 0 : index
    %74 = vector.load %arg4[%c14, %c0_21] : memref<32x128xf32, #tpu.memory_space<vmem>>, vector<1x128xf32>
    %75 = arith.cmpf ogt, %74, %71 : vector<1x128xf32>
    %76 = arith.select %75, %74, %71 : vector<1x128xi1>, vector<1x128xf32>
    %c14_i32 = arith.constant 14 : i32
    %77 = vector.broadcast %c14_i32 : i32 to vector<1x128xi32>
    %78 = arith.select %75, %77, %73 : vector<1x128xi1>, vector<1x128xi32>
    %c15 = arith.constant 15 : index
    %c0_22 = arith.constant 0 : index
    %79 = vector.load %arg4[%c15, %c0_22] : memref<32x128xf32, #tpu.memory_space<vmem>>, vector<1x128xf32>
    %80 = arith.cmpf ogt, %79, %76 : vector<1x128xf32>
    %81 = arith.select %80, %79, %76 : vector<1x128xi1>, vector<1x128xf32>
    %c15_i32 = arith.constant 15 : i32
    %82 = vector.broadcast %c15_i32 : i32 to vector<1x128xi32>
    %83 = arith.select %80, %82, %78 : vector<1x128xi1>, vector<1x128xi32>
    %c16 = arith.constant 16 : index
    %c0_23 = arith.constant 0 : index
    %84 = vector.load %arg4[%c16, %c0_23] : memref<32x128xf32, #tpu.memory_space<vmem>>, vector<1x128xf32>
    %85 = arith.cmpf ogt, %84, %81 : vector<1x128xf32>
    %86 = arith.select %85, %84, %81 : vector<1x128xi1>, vector<1x128xf32>
    %c16_i32 = arith.constant 16 : i32
    %87 = vector.broadcast %c16_i32 : i32 to vector<1x128xi32>
    %88 = arith.select %85, %87, %83 : vector<1x128xi1>, vector<1x128xi32>
    %c17 = arith.constant 17 : index
    %c0_24 = arith.constant 0 : index
    %89 = vector.load %arg4[%c17, %c0_24] : memref<32x128xf32, #tpu.memory_space<vmem>>, vector<1x128xf32>
    %90 = arith.cmpf ogt, %89, %86 : vector<1x128xf32>
    %91 = arith.select %90, %89, %86 : vector<1x128xi1>, vector<1x128xf32>
    %c17_i32 = arith.constant 17 : i32
    %92 = vector.broadcast %c17_i32 : i32 to vector<1x128xi32>
    %93 = arith.select %90, %92, %88 : vector<1x128xi1>, vector<1x128xi32>
    %c18 = arith.constant 18 : index
    %c0_25 = arith.constant 0 : index
    %94 = vector.load %arg4[%c18, %c0_25] : memref<32x128xf32, #tpu.memory_space<vmem>>, vector<1x128xf32>
    %95 = arith.cmpf ogt, %94, %91 : vector<1x128xf32>
    %96 = arith.select %95, %94, %91 : vector<1x128xi1>, vector<1x128xf32>
    %c18_i32 = arith.constant 18 : i32
    %97 = vector.broadcast %c18_i32 : i32 to vector<1x128xi32>
    %98 = arith.select %95, %97, %93 : vector<1x128xi1>, vector<1x128xi32>
    %c19 = arith.constant 19 : index
    %c0_26 = arith.constant 0 : index
    %99 = vector.load %arg4[%c19, %c0_26] : memref<32x128xf32, #tpu.memory_space<vmem>>, vector<1x128xf32>
    %100 = arith.cmpf ogt, %99, %96 : vector<1x128xf32>
    %101 = arith.select %100, %99, %96 : vector<1x128xi1>, vector<1x128xf32>
    %c19_i32 = arith.constant 19 : i32
    %102 = vector.broadcast %c19_i32 : i32 to vector<1x128xi32>
    %103 = arith.select %100, %102, %98 : vector<1x128xi1>, vector<1x128xi32>
    %c20 = arith.constant 20 : index
    %c0_27 = arith.constant 0 : index
    %104 = vector.load %arg4[%c20, %c0_27] : memref<32x128xf32, #tpu.memory_space<vmem>>, vector<1x128xf32>
    %105 = arith.cmpf ogt, %104, %101 : vector<1x128xf32>
    %106 = arith.select %105, %104, %101 : vector<1x128xi1>, vector<1x128xf32>
    %c20_i32 = arith.constant 20 : i32
    %107 = vector.broadcast %c20_i32 : i32 to vector<1x128xi32>
    %108 = arith.select %105, %107, %103 : vector<1x128xi1>, vector<1x128xi32>
    %c21 = arith.constant 21 : index
    %c0_28 = arith.constant 0 : index
    %109 = vector.load %arg4[%c21, %c0_28] : memref<32x128xf32, #tpu.memory_space<vmem>>, vector<1x128xf32>
    %110 = arith.cmpf ogt, %109, %106 : vector<1x128xf32>
    %111 = arith.select %110, %109, %106 : vector<1x128xi1>, vector<1x128xf32>
    %c21_i32 = arith.constant 21 : i32
    %112 = vector.broadcast %c21_i32 : i32 to vector<1x128xi32>
    %113 = arith.select %110, %112, %108 : vector<1x128xi1>, vector<1x128xi32>
    %c22 = arith.constant 22 : index
    %c0_29 = arith.constant 0 : index
    %114 = vector.load %arg4[%c22, %c0_29] : memref<32x128xf32, #tpu.memory_space<vmem>>, vector<1x128xf32>
    %115 = arith.cmpf ogt, %114, %111 : vector<1x128xf32>
    %116 = arith.select %115, %114, %111 : vector<1x128xi1>, vector<1x128xf32>
    %c22_i32 = arith.constant 22 : i32
    %117 = vector.broadcast %c22_i32 : i32 to vector<1x128xi32>
    %118 = arith.select %115, %117, %113 : vector<1x128xi1>, vector<1x128xi32>
    %c23 = arith.constant 23 : index
    %c0_30 = arith.constant 0 : index
    %119 = vector.load %arg4[%c23, %c0_30] : memref<32x128xf32, #tpu.memory_space<vmem>>, vector<1x128xf32>
    %120 = arith.cmpf ogt, %119, %116 : vector<1x128xf32>
    %121 = arith.select %120, %119, %116 : vector<1x128xi1>, vector<1x128xf32>
    %c23_i32 = arith.constant 23 : i32
    %122 = vector.broadcast %c23_i32 : i32 to vector<1x128xi32>
    %123 = arith.select %120, %122, %118 : vector<1x128xi1>, vector<1x128xi32>
    %c24 = arith.constant 24 : index
    %c0_31 = arith.constant 0 : index
    %124 = vector.load %arg4[%c24, %c0_31] : memref<32x128xf32, #tpu.memory_space<vmem>>, vector<1x128xf32>
    %125 = arith.cmpf ogt, %124, %121 : vector<1x128xf32>
    %126 = arith.select %125, %124, %121 : vector<1x128xi1>, vector<1x128xf32>
    %c24_i32 = arith.constant 24 : i32
    %127 = vector.broadcast %c24_i32 : i32 to vector<1x128xi32>
    %128 = arith.select %125, %127, %123 : vector<1x128xi1>, vector<1x128xi32>
    %c25 = arith.constant 25 : index
    %c0_32 = arith.constant 0 : index
    %129 = vector.load %arg4[%c25, %c0_32] : memref<32x128xf32, #tpu.memory_space<vmem>>, vector<1x128xf32>
    %130 = arith.cmpf ogt, %129, %126 : vector<1x128xf32>
    %131 = arith.select %130, %129, %126 : vector<1x128xi1>, vector<1x128xf32>
    %c25_i32 = arith.constant 25 : i32
    %132 = vector.broadcast %c25_i32 : i32 to vector<1x128xi32>
    %133 = arith.select %130, %132, %128 : vector<1x128xi1>, vector<1x128xi32>
    %c26 = arith.constant 26 : index
    %c0_33 = arith.constant 0 : index
    %134 = vector.load %arg4[%c26, %c0_33] : memref<32x128xf32, #tpu.memory_space<vmem>>, vector<1x128xf32>
    %135 = arith.cmpf ogt, %134, %131 : vector<1x128xf32>
    %136 = arith.select %135, %134, %131 : vector<1x128xi1>, vector<1x128xf32>
    %c26_i32 = arith.constant 26 : i32
    %137 = vector.broadcast %c26_i32 : i32 to vector<1x128xi32>
    %138 = arith.select %135, %137, %133 : vector<1x128xi1>, vector<1x128xi32>
    %c27 = arith.constant 27 : index
    %c0_34 = arith.constant 0 : index
    %139 = vector.load %arg4[%c27, %c0_34] : memref<32x128xf32, #tpu.memory_space<vmem>>, vector<1x128xf32>
    %140 = arith.cmpf ogt, %139, %136 : vector<1x128xf32>
    %141 = arith.select %140, %139, %136 : vector<1x128xi1>, vector<1x128xf32>
    %c27_i32 = arith.constant 27 : i32
    %142 = vector.broadcast %c27_i32 : i32 to vector<1x128xi32>
    %143 = arith.select %140, %142, %138 : vector<1x128xi1>, vector<1x128xi32>
    %c28 = arith.constant 28 : index
    %c0_35 = arith.constant 0 : index
    %144 = vector.load %arg4[%c28, %c0_35] : memref<32x128xf32, #tpu.memory_space<vmem>>, vector<1x128xf32>
    %145 = arith.cmpf ogt, %144, %141 : vector<1x128xf32>
    %146 = arith.select %145, %144, %141 : vector<1x128xi1>, vector<1x128xf32>
    %c28_i32 = arith.constant 28 : i32
    %147 = vector.broadcast %c28_i32 : i32 to vector<1x128xi32>
    %148 = arith.select %145, %147, %143 : vector<1x128xi1>, vector<1x128xi32>
    %c29 = arith.constant 29 : index
    %c0_36 = arith.constant 0 : index
    %149 = vector.load %arg4[%c29, %c0_36] : memref<32x128xf32, #tpu.memory_space<vmem>>, vector<1x128xf32>
    %150 = arith.cmpf ogt, %149, %146 : vector<1x128xf32>
    %151 = arith.select %150, %149, %146 : vector<1x128xi1>, vector<1x128xf32>
    %c29_i32 = arith.constant 29 : i32
    %152 = vector.broadcast %c29_i32 : i32 to vector<1x128xi32>
    %153 = arith.select %150, %152, %148 : vector<1x128xi1>, vector<1x128xi32>
    %c30 = arith.constant 30 : index
    %c0_37 = arith.constant 0 : index
    %154 = vector.load %arg4[%c30, %c0_37] : memref<32x128xf32, #tpu.memory_space<vmem>>, vector<1x128xf32>
    %155 = arith.cmpf ogt, %154, %151 : vector<1x128xf32>
    %156 = arith.select %155, %154, %151 : vector<1x128xi1>, vector<1x128xf32>
    %c30_i32 = arith.constant 30 : i32
    %157 = vector.broadcast %c30_i32 : i32 to vector<1x128xi32>
    %158 = arith.select %155, %157, %153 : vector<1x128xi1>, vector<1x128xi32>
    %c31 = arith.constant 31 : index
    %c0_38 = arith.constant 0 : index
    %159 = vector.load %arg4[%c31, %c0_38] : memref<32x128xf32, #tpu.memory_space<vmem>>, vector<1x128xf32>
    %160 = arith.cmpf ogt, %159, %156 : vector<1x128xf32>
    %c31_i32 = arith.constant 31 : i32
    %161 = vector.broadcast %c31_i32 : i32 to vector<1x128xi32>
    %162 = arith.select %160, %161, %158 : vector<1x128xi1>, vector<1x128xi32>
    %c1_i32_39 = arith.constant 1 : i32
    %163 = tpu.dynamic_rotate %162 by %c1_i32_39 dim 1 : vector<1x128xi32>, i32 -> vector<1x128xi32>
    %164 = tpu.iota {dimensions = array<i32: 1>} : vector<1x128xi32>
    %c0_i32_40 = arith.constant 0 : i32
    %165 = vector.broadcast %c0_i32_40 : i32 to vector<1x128xi32>
    %166 = arith.cmpi eq, %164, %165 : vector<1x128xi32>
    %c0_41 = arith.constant 0 : index
    %c0_42 = arith.constant 0 : index
    %167 = vector.load %arg5[%c0_41, %c0_42] : memref<1x1xi32, #tpu.memory_space<vmem>>, vector<1x1xi32>
    %168 = vector.shape_cast %167 : vector<1x1xi32> to vector<1x1xi32>
    %169 = vector.broadcast %168 : vector<1x1xi32> to vector<1x128xi32>
    %170 = arith.select %166, %169, %163 : vector<1x128xi1>, vector<1x128xi32>
    %171 = arith.cmpi ne, %162, %170 : vector<1x128xi32>
    %c0_i32_43 = arith.constant 0 : i32
    %172 = vector.broadcast %c0_i32_43 : i32 to vector<1x128xi32>
    %173 = arith.cmpi ne, %162, %172 : vector<1x128xi32>
    %174 = arith.andi %171, %173 : vector<1x128xi1>
    %c-1_i32 = arith.constant -1 : i32
    %175 = vector.broadcast %c-1_i32 : i32 to vector<1x128xi32>
    %176 = arith.select %174, %162, %175 : vector<1x128xi1>, vector<1x128xi32>
    %c0_44 = arith.constant 0 : index
    %c0_45 = arith.constant 0 : index
    %c0_46 = arith.constant 0 : index
    %177 = vector.load %arg3[%c0_44, %c0_45, %c0_46] : memref<1x1x128xi32, #tpu.memory_space<vmem>>, vector<1x1x128xi32>
    %178 = vector.shape_cast %177 : vector<1x1x128xi32> to vector<1x128xi32>
    %179 = vector.shape_cast %176 : vector<1x128xi32> to vector<1x1x128xi32>
    tpu.vector_store %arg3[%c0_44, %c0_45, %c0_46], %179 {strides = array<i32>} : memref<1x1x128xi32, #tpu.memory_space<vmem>>, vector<1x1x128xi32>,
    %180 = vector.extract_strided_slice %163 {offsets = [0, 0], sizes = [1, 1], strides = [1, 1]} : vector<1x128xi32> to vector<1x1xi32>
    %c0_47 = arith.constant 0 : index
    %c0_48 = arith.constant 0 : index
    %181 = vector.load %arg5[%c0_47, %c0_48] : memref<1x1xi32, #tpu.memory_space<vmem>>, vector<1x1xi32>
    tpu.vector_store %arg5[%c0_47, %c0_48], %180 {strides = array<i32>} : memref<1x1xi32, #tpu.memory_space<vmem>>, vector<1x1xi32>,
    return
  }
  func.func @transform_0(%arg0: i32, %arg1: i32) -> (i32, i32, i32) {
    %c0_i32 = arith.constant 0 : i32
    %c0_i32_0 = arith.constant 0 : i32
    return %arg0, %arg1, %c0_i32 : i32, i32, i32
  }
  func.func @transform_1(%arg0: i32, %arg1: i32) -> (i32, i32, i32) {
    %c0_i32 = arith.constant 0 : i32
    %c0_i32_0 = arith.constant 0 : i32
    return %arg0, %c0_i32, %arg1 : i32, i32, i32
  }
}

</mosaic_0001>

<llo_original>
// kernel: _ctc_greedy_indices.1
$region0: #{_ctc_greedy_indices.1}
  #allocation0 [shape = 'u32[]', space=smem, size = 0x4, offset = 0x4, fixed_abs, tag = 'smem constant byte address 0x4 - core index']
  #allocation1 [shape = 'u32[144,128]{1,0:T(1,128)}', space=vmem, size = 0x12000, scoped, tag = 'internal scratch']
  #allocation2 [shape = 'f32[32,128]{1,0:T(8,128)}', space=vmem, size = 0x4000, scoped, tag = 'scratch operand']
  #allocation3 [shape = 's32[1,1]{1,0:T(1,128)}', space=vmem, size = 0x200, scoped, tag = 'scratch operand']
  %s0 = inlined_call_operand.hbm [shape: f32[1,16,32], index: 0, kind: input, shape index: {}]
  %s1 = inlined_call_operand.hbm [shape: s32[1,1,128], index: 1, kind: output, shape index: {}]
  %s2 = sld [smem:[#allocation0]]
  $region22: #{_ctc_greedy_indices.1} parent=0
    _
  %s4 = ssub.s32 1, %s2
  %s5 = scalar_select 0, %s4, %s2
  $region1: #{_ctc_greedy_indices.1} parent=0
    #allocation4 [shape = 'u8[65536]{0}', space=vmem, size = 0x10000, scoped, tag = 'input window, operand 0, single buffered']
    #allocation5 [shape = 's32[1]{0}', space=sflag, size = 0x4, scoped, tag = 'scoped memory for _ctc_greedy_indices.1']
    #allocation6 [shape = 's32[1]{0}', space=sflag, size = 0x4, scoped, tag = 'scoped memory for _ctc_greedy_indices.1']
    #allocation7 [shape = 'u8[512]{0}', space=vmem, size = 0x400, scoped, tag = 'output window, operand 0, single buffered']
    %6 = vsyncpa [#allocation5], 0
    %7 = vsyncpa [#allocation6], 0
    // Predicated region
    $region2: #{_ctc_greedy_indices.1} parent=1 // pred_check
      _
    $region3: #{_ctc_greedy_indices.1} parent=1 // pred_check_branch
      %9 = sbr.rel (0) target = $region5
    $region4: #{_ctc_greedy_indices.1} parent=1 // pred_region
      %s11 = ssub.s32 2048, 256
      %12 = vsyncadd [#allocation5], %s11
      %s13 = sshll.u32 [#allocation4], 4
      %s14 = int_to_ptr.vmem [resolvable:$true] %s13
      %19 = dma.hbm_to_vmem [thread:$0]  %s0, 256, %s14, [#allocation5], 128, 128, 8
    $region5: #{_ctc_greedy_indices.1} parent=1 // pred_fallthru
      _
    // Predicated region
    $region6: #{_ctc_greedy_indices.1} parent=1 // pred_check
      _
    $region7: #{_ctc_greedy_indices.1} parent=1 // pred_check_branch
      %21 = sbr.rel (0) target = $region9
    $region8: #{_ctc_greedy_indices.1} parent=1 // pred_region
      %22 = dma.done [#allocation5], 2048
    $region9: #{_ctc_greedy_indices.1} parent=1 // pred_fallthru
      _
    %p23 = scmp.eq.s32.totalorder 0, 0
    // Predicated region
    $region10: #{_ctc_greedy_indices.1} parent=1 // pred_check
      %p24 = pneg %p23
    $region11: #{_ctc_greedy_indices.1} parent=1 // pred_check_branch
      %26 = sbr.rel (%p24) target = $region13
    $region12: #{_ctc_greedy_indices.1} parent=1 // pred_region
      %vm27 = vcmask 0
      %28 = vst.msk [vmem:[#allocation3] sm:$0x1] %vm27, 4294967295
    $region13: #{_ctc_greedy_indices.1} parent=1 // pred_fallthru
      _
    %v29 = vld [vmem:[#allocation4] sm:$0xff]
    %v30 = vld [vmem:[#allocation4 + $0x8] sm:$0xff]
    %v31 = vld [vmem:[#allocation4 + $0x10] sm:$0xff]
    %v32 = vld [vmem:[#allocation4 + $0x18] sm:$0xff]
    %v33 = vld [vmem:[#allocation4 + $0x20] sm:$0xff]
    %v34 = vld [vmem:[#allocation4 + $0x28] sm:$0xff]
    %v35 = vld [vmem:[#allocation4 + $0x30] sm:$0xff]
    %v36 = vld [vmem:[#allocation4 + $0x38] sm:$0xff]
    %v37 = vld [vmem:[#allocation4 + $0x40] sm:$0xff]
    %v38 = vld [vmem:[#allocation4 + $0x48] sm:$0xff]
    %v39 = vld [vmem:[#allocation4 + $0x50] sm:$0xff]
    %v40 = vld [vmem:[#allocation4 + $0x58] sm:$0xff]
    %v41 = vld [vmem:[#allocation4 + $0x60] sm:$0xff]
    %v42 = vld [vmem:[#allocation4 + $0x68] sm:$0xff]
    %v43 = vld [vmem:[#allocation4 + $0x70] sm:$0xff]
    %v44 = vld [vmem:[#allocation4 + $0x78] sm:$0xff]
    %45 = vxpose.xlu0.b32.start [1/16] %v29, 128
    %46 = vxpose.xlu0.b32.cont [2/16] %v30, 128
    %47 = vxpose.xlu0.b32.cont [3/16] %v31, 128
    %48 = vxpose.xlu0.b32.cont [4/16] %v32, 128
    %49 = vxpose.xlu0.b32.cont [5/16] %v33, 128
    %50 = vxpose.xlu0.b32.cont [6/16] %v34, 128
    %51 = vxpose.xlu0.b32.cont [7/16] %v35, 128
    %52 = vxpose.xlu0.b32.cont [8/16] %v36, 128
    %53 = vxpose.xlu0.b32.cont [9/16] %v37, 128
    %54 = vxpose.xlu0.b32.cont [10/16] %v38, 128
    %55 = vxpose.xlu0.b32.cont [11/16] %v39, 128
    %56 = vxpose.xlu0.b32.cont [12/16] %v40, 128
    %57 = vxpose.xlu0.b32.cont [13/16] %v41, 128
    %58 = vxpose.xlu0.b32.cont [14/16] %v42, 128
    %59 = vxpose.xlu0.b32.cont [15/16] %v43, 128
    %60 = vxpose.xlu0.b32.end [16/16] %v44, 128
    %v61 = vpop.trf.xlu0
    %v62 = vpop.trf.xlu0
    %v63 = vpop.trf.xlu0
    %v64 = vpop.trf.xlu0
    %v65 = vpop.trf.xlu0
    %v66 = vpop.trf.xlu0
    %v67 = vpop.trf.xlu0
    %v68 = vpop.trf.xlu0
    %v69 = vpop.trf.xlu0
    %v70 = vpop.trf.xlu0
    %v71 = vpop.trf.xlu0
    %v72 = vpop.trf.xlu0
    %v73 = vpop.trf.xlu0
    %v74 = vpop.trf.xlu0
    %v75 = vpop.trf.xlu0
    %v76 = vpop.trf.xlu0
    %77 = vst [vmem:[#allocation2] sm:$0xff] %v61
    %78 = vst [vmem:[#allocation2 + $0x8] sm:$0xff] %v62
    %79 = vst [vmem:[#allocation2 + $0x10] sm:$0xff] %v63
    %80 = vst [vmem:[#allocation2 + $0x18] sm:$0xff] %v64
    %v81 = vld [vmem:[#allocation2] sm:$0x1]
    %v82 = vld [vmem:[#allocation2 + $0x1] sm:$0x1]
    %vm83 = vcmp.gt.f32.partialorder %v82, %v81
    %v84 = vsel %vm83, %v82, %v81
    %v85 = vsel %vm83, 1, 0
    %v86 = vld [vmem:[#allocation2 + $0x2] sm:$0x1]
    %vm87 = vcmp.gt.f32.partialorder %v86, %v84
    %v88 = vsel %vm87, %v86, %v84
    %v89 = vsel %vm87, 2, %v85
    %v90 = vld [vmem:[#allocation2 + $0x3] sm:$0x1]
    %vm91 = vcmp.gt.f32.partialorder %v90, %v88
    %v92 = vsel %vm91, %v90, %v88
    %v93 = vsel %vm91, 3, %v89
    %v94 = vld [vmem:[#allocation2 + $0x4] sm:$0x1]
    %vm95 = vcmp.gt.f32.partialorder %v94, %v92
    %v96 = vsel %vm95, %v94, %v92
    %v97 = vsel %vm95, 4, %v93
    %v98 = vld [vmem:[#allocation2 + $0x5] sm:$0x1]
    %vm99 = vcmp.gt.f32.partialorder %v98, %v96
    %v100 = vsel %vm99, %v98, %v96
    %v101 = vsel %vm99, 5, %v97
    %v102 = vld [vmem:[#allocation2 + $0x6] sm:$0x1]
    %vm103 = vcmp.gt.f32.partialorder %v102, %v100
    %v104 = vsel %vm103, %v102, %v100
    %v105 = vsel %vm103, 6, %v101
    %v106 = vld [vmem:[#allocation2 + $0x7] sm:$0x1]
    %vm107 = vcmp.gt.f32.partialorder %v106, %v104
    %v108 = vsel %vm107, %v106, %v104
    %v109 = vsel %vm107, 7, %v105
    %v110 = vld [vmem:[#allocation2 + $0x8] sm:$0x1]
    %vm111 = vcmp.gt.f32.partialorder %v110, %v108
    %v112 = vsel %vm111, %v110, %v108
    %v113 = vsel %vm111, 8, %v109
    %v114 = vld [vmem:[#allocation2 + $0x9] sm:$0x1]
    %vm115 = vcmp.gt.f32.partialorder %v114, %v112
    %v116 = vsel %vm115, %v114, %v112
    %v117 = vsel %vm115, 9, %v113
    %v118 = vld [vmem:[#allocation2 + $0xa] sm:$0x1]
    %vm119 = vcmp.gt.f32.partialorder %v118, %v116
    %v120 = vsel %vm119, %v118, %v116
    %v121 = vsel %vm119, 10, %v117
    %v122 = vld [vmem:[#allocation2 + $0xb] sm:$0x1]
    %vm123 = vcmp.gt.f32.partialorder %v122, %v120
    %v124 = vsel %vm123, %v122, %v120
    %v125 = vsel %vm123, 11, %v121
    %v126 = vld [vmem:[#allocation2 + $0xc] sm:$0x1]
    %vm127 = vcmp.gt.f32.partialorder %v126, %v124
    %v128 = vsel %vm127, %v126, %v124
    %v129 = vsel %vm127, 12, %v125
    %v130 = vld [vmem:[#allocation2 + $0xd] sm:$0x1]
    %vm131 = vcmp.gt.f32.partialorder %v130, %v128
    %v132 = vsel %vm131, %v130, %v128
    %v133 = vsel %vm131, 13, %v129
    %v134 = vld [vmem:[#allocation2 + $0xe] sm:$0x1]
    %vm135 = vcmp.gt.f32.partialorder %v134, %v132
    %v136 = vsel %vm135, %v134, %v132
    %v137 = vsel %vm135, 14, %v133
    %v138 = vld [vmem:[#allocation2 + $0xf] sm:$0x1]
    %vm139 = vcmp.gt.f32.partialorder %v138, %v136
    %v140 = vsel %vm139, %v138, %v136
    %v141 = vsel %vm139, 15, %v137
    %v142 = vld [vmem:[#allocation2 + $0x10] sm:$0x1]
    %vm143 = vcmp.gt.f32.partialorder %v142, %v140
    %v144 = vsel %vm143, %v142, %v140
    %v145 = vsel %vm143, 16, %v141
    %v146 = vld [vmem:[#allocation2 + $0x11] sm:$0x1]
    %vm147 = vcmp.gt.f32.partialorder %v146, %v144
    %v148 = vsel %vm147, %v146, %v144
    %v149 = vsel %vm147, 17, %v145
    %v150 = vld [vmem:[#allocation2 + $0x12] sm:$0x1]
    %vm151 = vcmp.gt.f32.partialorder %v150, %v148
    %v152 = vsel %vm151, %v150, %v148
    %v153 = vsel %vm151, 18, %v149
    %v154 = vld [vmem:[#allocation2 + $0x13] sm:$0x1]
    %vm155 = vcmp.gt.f32.partialorder %v154, %v152
    %v156 = vsel %vm155, %v154, %v152
    %v157 = vsel %vm155, 19, %v153
    %v158 = vld [vmem:[#allocation2 + $0x14] sm:$0x1]
    %vm159 = vcmp.gt.f32.partialorder %v158, %v156
    %v160 = vsel %vm159, %v158, %v156
    %v161 = vsel %vm159, 20, %v157
    %v162 = vld [vmem:[#allocation2 + $0x15] sm:$0x1]
    %vm163 = vcmp.gt.f32.partialorder %v162, %v160
    %v164 = vsel %vm163, %v162, %v160
    %v165 = vsel %vm163, 21, %v161
    %v166 = vld [vmem:[#allocation2 + $0x16] sm:$0x1]
    %vm167 = vcmp.gt.f32.partialorder %v166, %v164
    %v168 = vsel %vm167, %v166, %v164
    %v169 = vsel %vm167, 22, %v165
    %v170 = vld [vmem:[#allocation2 + $0x17] sm:$0x1]
    %vm171 = vcmp.gt.f32.partialorder %v170, %v168
    %v172 = vsel %vm171, %v170, %v168
    %v173 = vsel %vm171, 23, %v169
    %v174 = vld [vmem:[#allocation2 + $0x18] sm:$0x1]
    %vm175 = vcmp.gt.f32.partialorder %v174, %v172
    %v176 = vsel %vm175, %v174, %v172
    %v177 = vsel %vm175, 24, %v173
    %v178 = vld [vmem:[#allocation2 + $0x19] sm:$0x1]
    %vm179 = vcmp.gt.f32.partialorder %v178, %v176
    %v180 = vsel %vm179, %v178, %v176
    %v181 = vsel %vm179, 25, %v177
    %v182 = vld [vmem:[#allocation2 + $0x1a] sm:$0x1]
    %vm183 = vcmp.gt.f32.partialorder %v182, %v180
    %v184 = vsel %vm183, %v182, %v180
    %v185 = vsel %vm183, 26, %v181
    %v186 = vld [vmem:[#allocation2 + $0x1b] sm:$0x1]
    %vm187 = vcmp.gt.f32.partialorder %v186, %v184
    %v188 = vsel %vm187, %v186, %v184
    %v189 = vsel %vm187, 27, %v185
    %v190 = vld [vmem:[#allocation2 + $0x1c] sm:$0x1]
    %vm191 = vcmp.gt.f32.partialorder %v190, %v188
    %v192 = vsel %vm191, %v190, %v188
    %v193 = vsel %vm191, 28, %v189
    %v194 = vld [vmem:[#allocation2 + $0x1d] sm:$0x1]
    %vm195 = vcmp.gt.f32.partialorder %v194, %v192
    %v196 = vsel %vm195, %v194, %v192
    %v197 = vsel %vm195, 29, %v193
    %v198 = vld [vmem:[#allocation2 + $0x1e] sm:$0x1]
    %vm199 = vcmp.gt.f32.partialorder %v198, %v196
    %v200 = vsel %vm199, %v198, %v196
    %v201 = vsel %vm199, 30, %v197
    %v202 = vld [vmem:[#allocation2 + $0x1f] sm:$0x1]
    %vm203 = vcmp.gt.f32.partialorder %v202, %v200
    %v204 = vsel %vm203, 31, %v201
    %205 = vrot.lane.b32.xlu0 %v204, 1
    %v206 = vpop.permute.xlu0 %205
    %v207 = vlaneseq
    %v208 = vand.u32 %v207, 127
    %vm209 = vcmp.eq.s32.totalorder %v208, 0
    %v210 = vld [vmem:[#allocation3] sm:$0x1]
    %211 = vset.pattern.permute.xlu0 0
    %212 = vperm.xlu0 %211, %v210
    %v213 = vpop.permute.xlu0 %212
    %v214 = vlaneseq
    %v215 = vshrl.u32 %v214, 7
    %v216 = vsub.s32 0, %v215
    %v217 = vrot.slane %v213, %v216
    %v218 = vsel %vm209, %v217, %v206
    %vm219 = vcmp.ne.s32.totalorder %v204, %v218
    %vm220 = vcmp.ne.s32.totalorder %v204, 0
    %vm221 = vmand %vm219, %vm220
    %v222 = vsel %vm221, %v204, 4294967295
    %223 = vst [vmem:[#allocation7] sm:$0x1] %v222
    %vm224 = vcmask 0
    %225 = vst.msk [vmem:[#allocation3] sm:$0x1] %vm224, %v206
    // Predicated region
    $region14: #{_ctc_greedy_indices.1} parent=1 // pred_check
      _
    $region15: #{_ctc_greedy_indices.1} parent=1 // pred_check_branch
      %227 = sbr.rel (0) target = $region17
    $region16: #{_ctc_greedy_indices.1} parent=1 // pred_region
      %s229 = ssub.s32 16, 16
      %230 = vsyncadd [#allocation6], %s229
      %s232 = sshll.u32 [#allocation7], 4
      %s233 = int_to_ptr.vmem [resolvable:$true] %s232
      %235 = dma.vmem_to_hbm [thread:$0]  %s233, 16, %s1, [#allocation6]
    $region17: #{_ctc_greedy_indices.1} parent=1 // pred_fallthru
      _
    // Predicated region
    $region18: #{_ctc_greedy_indices.1} parent=1 // pred_check
      _
    $region19: #{_ctc_greedy_indices.1} parent=1 // pred_check_branch
      %237 = sbr.rel (0) target = $region21
    $region20: #{_ctc_greedy_indices.1} parent=1 // pred_region
      %238 = dma.done [#allocation6], 16
    $region21: #{_ctc_greedy_indices.1} parent=1 // pred_fallthru
      _
    %239 = vsyncpa [#allocation5], 1
    %240 = vsyncpa [#allocation6], 1

</llo_original>
